<compile_context>
chip_gen: v6e
topology: v6e:2x2x1
jax: 0.10.0
libtpu: 0.0.40
codegen_flags: <defaults>
</compile_context>

<pallas_src>
import functools

import jax
import jax.numpy as jnp
from jax.experimental import pallas as pl
from jax.experimental.pallas import tpu as pltpu

MARGIN = 0.1


def _rankloss_kernel(v2g_ref, l2g_ref, out_ref, *, b_total, tb, steps):
    """Processes one (tb, N) row tile; accumulates the hinge sum into out_ref.

    out_ref is a (1, 8, 128) f32 VMEM block, resident across the inner
    ("arbitrary") grid axis; every element of the block carries the same
    running partial sum (the wrapper reads [c, 0, 0]).
    """
    s = pl.program_id(1)

    @pl.when(s == 0)
    def _init():
        out_ref[...] = jnp.zeros_like(out_ref)

    x = v2g_ref[...].astype(jnp.float32)                        # (tb, N)

    # Row-wise numerically-stable softmax, without materializing p = e / Z:
    #   p[i, j] - p[i, t_i] == (e[i, j] - e[i, t_i]) * (1 / Z_i)
    m = jnp.max(x, axis=-1, keepdims=True)                      # (tb, 1)
    e = jnp.exp(x - m)                                          # (tb, N)  EUP
    z = jnp.sum(e, axis=-1, keepdims=True)                      # (tb, 1)  XLU

    # Gather e[i, l2g[i]] via a lane-iota one-hot (no data-dependent indexing).
    col = jax.lax.broadcasted_iota(jnp.int32, x.shape, 1)       # (tb, N)
    onehot = (col == l2g_ref[...]).astype(jnp.float32)          # (tb, N)
    e_t = jnp.sum(e * onehot, axis=-1, keepdims=True)           # (tb, 1)

    inv_z = pl.reciprocal(z, approx=False)                      # (tb, 1)  EUP
    hinge = jnp.maximum((e - e_t) * inv_z + MARGIN, 0.0)        # (tb, N)

    # Mask rows that exist only because B was padded up to the grid total.
    row0 = (pl.program_id(0) * steps + s) * tb
    rows = row0 + jax.lax.broadcasted_iota(jnp.int32, (tb, 1), 0)
    valid = (rows < b_total).astype(jnp.float32)                # (tb, 1)

    tile_sum = jnp.sum(jnp.sum(hinge, axis=-1, keepdims=True) * valid)
    out_ref[...] += tile_sum


def rankloss(v2g_sim_matrix, l2g_sim_matrix, *,
             target_block_bytes=2 << 20, num_splits=2):
    """v2g_sim_matrix: (B, N) float (bf16 recommended); l2g_sim_matrix: (B,) ints."""
    B, N = v2g_sim_matrix.shape
    in_bytes = jnp.dtype(v2g_sim_matrix.dtype).itemsize
    l2g_2d = l2g_sim_matrix.astype(jnp.int32).reshape(B, 1)

    # Row tile: keep N whole (lane-dense); pick TB so a block is ~target bytes,
    # a multiple of 8, capped at 1024 rows and at B rounded up to 8.
    b_pad8 = ((B + 7) // 8) * 8
    tb = (target_block_bytes // max(N * in_bytes, 1)) // 8 * 8
    tb = int(max(8, min(tb, 1024, b_pad8)))

    # Leading "parallel" axis (per-TensorCore partial sums on v7x; free elsewhere).
    num_splits = int(max(1, min(num_splits, pl.cdiv(B, tb))))
    steps = int(pl.cdiv(B, tb * num_splits))
    total_rows = num_splits * steps * tb

    pad = total_rows - B
    if pad:
        v2g_p = jnp.pad(v2g_sim_matrix, ((0, pad), (0, 0)))
        l2g_p = jnp.pad(l2g_2d, ((0, pad), (0, 0)))
    else:
        v2g_p, l2g_p = v2g_sim_matrix, l2g_2d

    # VMEM budget: 2 buffers x (v2g tile + l2g tile + out tile) + headroom.
    block_bytes = tb * N * in_bytes + tb * 4 + 8 * 128 * 4
    vmem_limit = int(min(32 << 20, max(16 << 20, 4 * block_bytes + (2 << 20))))

    kernel = functools.partial(_rankloss_kernel, b_total=B, tb=tb, steps=steps)

    partials = pl.pallas_call(
        kernel,
        out_shape=jax.ShapeDtypeStruct((num_splits, 8, 128), jnp.float32),
        grid=(num_splits, steps),
        in_specs=[
            pl.BlockSpec((tb, N), lambda c, s: (c * steps + s, 0)),
            pl.BlockSpec((tb, 1), lambda c, s: (c * steps + s, 0)),
        ],
        out_specs=pl.BlockSpec((1, 8, 128), lambda c, s: (c, 0, 0)),
        compiler_params=pltpu.CompilerParams(
            dimension_semantics=("parallel", "arbitrary"),
            vmem_limit_bytes=vmem_limit,
        ),
        cost_estimate=pl.CostEstimate(
            flops=8 * total_rows * N,
            transcendentals=total_rows * N,
            bytes_accessed=total_rows * N * in_bytes + total_rows * 4
                           + num_splits * 8 * 128 * 4,
        ),
    )(v2g_p, l2g_p)

    # Each partial block is a broadcast scalar; pick one element per split,
    # sum across splits, and divide by B exactly once here.
    return jnp.sum(partials[:, 0, 0]) / jnp.float32(B)


def rankloss_ref(v2g, l2g):
    """Pure-JAX reference mirroring the PyTorch double loop."""
    p = jax.nn.softmax(v2g.astype(jnp.float32), axis=-1)
    tgt = jnp.take_along_axis(p, l2g.reshape(-1, 1).astype(jnp.int32), axis=1)
    hinge = jnp.maximum(p - tgt + MARGIN, 0.0)
    return jnp.sum(hinge) / v2g.shape[0]


if __name__ == "__main__":
    key = jax.random.PRNGKey(0)
    k1, k2, k3, k4 = jax.random.split(key, 4)

    # --- case 1: small sim matrix, single tile, bf16 HBM traffic ---
    B, N = 8, 128
    v2g = jax.random.normal(k1, (B, N), dtype=jnp.float32).astype(jnp.bfloat16)
    l2g = jax.random.randint(k2, (B,), 0, N, dtype=jnp.int32)

    out = rankloss(v2g, l2g)
    jax.block_until_ready(out)
    ref = rankloss_ref(v2g, l2g)
    assert jnp.allclose(out, ref, rtol=1e-4, atol=1e-4), (out, ref)

    # --- case 2: exercises the grid, 2-way split, padding + row masking ---
    B2, N2 = 20, 256
    v2g2 = jax.random.normal(k3, (B2, N2), dtype=jnp.float32).astype(jnp.bfloat16)
    l2g2 = jax.random.randint(k4, (B2,), 0, N2, dtype=jnp.int32)

    out2 = rankloss(v2g2, l2g2, target_block_bytes=8 * N2 * 2)  # force tb=8, multi-step
    jax.block_until_ready(out2)
    ref2 = rankloss_ref(v2g2, l2g2)
    assert jnp.allclose(out2, ref2, rtol=1e-4, atol=1e-4), (out2, ref2)

    print("KERNEL_OK")
</pallas_src>

<mosaic_0001>
module attributes {stable_mosaic.version = 11 : i64} {
  func.func @_rankloss_kernel(%arg0: i32, %arg1: i32, %arg2: memref<8x128xbf16, #tpu.memory_space<vmem>>, %arg3: memref<8x1xi32, #tpu.memory_space<vmem>>, %arg4: memref<1x8x128xf32, #tpu.memory_space<vmem>>) attributes {dimension_semantics = [#tpu.dimension_semantics<parallel>, #tpu.dimension_semantics<arbitrary>], iteration_bounds = array<i64: 1, 1>, scalar_prefetch = 0 : i64, scratch_operands = 0 : i64, tpu.core_type = #tpu.core_type<tc>, window_params = [{transform_indices = @transform_0, window_bounds = array<i64: 8, 128>}, {transform_indices = @transform_1, window_bounds = array<i64: 8, 1>}, {transform_indices = @transform_2, window_bounds = array<i64: 1, 8, 128>}]} {
    %c0_i32 = arith.constant 0 : i32
    %0 = arith.cmpi eq, %arg1, %c0_i32 : i32
    %1 = arith.extui %0 : i1 to i32
    %c0_i32_0 = arith.constant 0 : i32
    %2 = arith.cmpi ne, %1, %c0_i32_0 : i32
    scf.if %2 {
      %cst_17 = arith.constant 0.000000e+00 : f32
      %51 = vector.broadcast %cst_17 : f32 to vector<1x8x128xf32>
      %c0_18 = arith.constant 0 : index
      %c0_19 = arith.constant 0 : index
      %c0_20 = arith.constant 0 : index
      %52 = vector.load %arg4[%c0_18, %c0_19, %c0_20] : memref<1x8x128xf32, #tpu.memory_space<vmem>>, vector<1x8x128xf32>
      tpu.vector_store %arg4[%c0_18, %c0_19, %c0_20], %51 {strides = array<i32>} : memref<1x8x128xf32, #tpu.memory_space<vmem>>, vector<1x8x128xf32>,
    } else {
    }
    %c0 = arith.constant 0 : index
    %c0_1 = arith.constant 0 : index
    %3 = vector.load %arg2[%c0, %c0_1] : memref<8x128xbf16, #tpu.memory_space<vmem>>, vector<8x128xbf16>
    %4 = arith.extf %3 : vector<8x128xbf16> to vector<8x128xf32>
    %cst = arith.constant dense<0xFF800000> : vector<8xf32>
    %5 = vector.multi_reduction <maximumf>, %4, %cst [1] : vector<8x128xf32> to vector<8xf32>
    %6 = vector.shape_cast %5 : vector<8xf32> to vector<8x1xf32>
    %7 = vector.broadcast %6 : vector<8x1xf32> to vector<8x128xf32>
    %8 = arith.subf %4, %7 : vector<8x128xf32>
    %9 = math.exp %8 : vector<8x128xf32>
    %cst_2 = arith.constant dense<0.000000e+00> : vector<8xf32>
    %10 = vector.multi_reduction <add>, %9, %cst_2 [1] : vector<8x128xf32> to vector<8xf32>
    %11 = vector.shape_cast %10 : vector<8xf32> to vector<8x1xf32>
    %12 = tpu.iota {dimensions = array<i32: 1>} : vector<8x128xi32>
    %c0_3 = arith.constant 0 : index
    %c0_4 = arith.constant 0 : index
    %13 = vector.load %arg3[%c0_3, %c0_4] : memref<8x1xi32, #tpu.memory_space<vmem>>, vector<8x1xi32>
    %14 = vector.broadcast %13 : vector<8x1xi32> to vector<8x128xi32>
    %15 = arith.cmpi eq, %12, %14 : vector<8x128xi32>
    %16 = arith.extui %15 : vector<8x128xi1> to vector<8x128xi32>
    %17 = arith.sitofp %16 : vector<8x128xi32> to vector<8x128xf32>
    %18 = arith.mulf %9, %17 : vector<8x128xf32>
    %cst_5 = arith.constant dense<0.000000e+00> : vector<8xf32>
    %19 = vector.multi_reduction <add>, %18, %cst_5 [1] : vector<8x128xf32> to vector<8xf32>
    %20 = vector.shape_cast %19 : vector<8xf32> to vector<8x1xf32>
    %21 = tpu.reciprocal %11 : vector<8x1xf32> -> vector<8x1xf32>
    %22 = vector.broadcast %20 : vector<8x1xf32> to vector<8x128xf32>
    %23 = arith.subf %9, %22 : vector<8x128xf32>
    %24 = vector.broadcast %21 : vector<8x1xf32> to vector<8x128xf32>
    %25 = arith.mulf %23, %24 : vector<8x128xf32>
    %cst_6 = arith.constant 1.000000e-01 : f32
    %26 = vector.broadcast %cst_6 : f32 to vector<8x128xf32>
    %27 = arith.addf %25, %26 : vector<8x128xf32>
    %cst_7 = arith.constant 0.000000e+00 : f32
    %28 = vector.broadcast %cst_7 : f32 to vector<8x128xf32>
    %29 = arith.maximumf %27, %28 : vector<8x128xf32>
    %c1_i32 = arith.constant 1 : i32
    %30 = arith.muli %arg0, %c1_i32 : i32
    %31 = arith.addi %30, %arg1 : i32
    %c8_i32 = arith.constant 8 : i32
    %32 = arith.muli %31, %c8_i32 : i32
    %33 = tpu.iota {dimensions = array<i32: 0>} : vector<8x1xi32>
    %34 = vector.broadcast %32 : i32 to vector<8x1xi32>
    %35 = arith.addi %34, %33 : vector<8x1xi32>
    %c8_i32_8 = arith.constant 8 : i32
    %36 = vector.broadcast %c8_i32_8 : i32 to vector<8x1xi32>
    %37 = arith.cmpi slt, %35, %36 : vector<8x1xi32>
    %38 = arith.extui %37 : vector<8x1xi1> to vector<8x1xi32>
    %39 = arith.sitofp %38 : vector<8x1xi32> to vector<8x1xf32>
    %cst_9 = arith.constant dense<0.000000e+00> : vector<8xf32>
    %40 = vector.multi_reduction <add>, %29, %cst_9 [1] : vector<8x128xf32> to vector<8xf32>
    %41 = vector.shape_cast %40 : vector<8xf32> to vector<8x1xf32>
    %42 = arith.mulf %41, %39 : vector<8x1xf32>
    %43 = vector.shape_cast %42 : vector<8x1xf32> to vector<1x8x1xf32>
    %cst_10 = arith.constant dense<0.000000e+00> : vector<1xf32>
    %44 = vector.multi_reduction <add>, %43, %cst_10 [1, 2] : vector<1x8x1xf32> to vector<1xf32>
    %45 = vector.shape_cast %44 : vector<1xf32> to vector<1x1x1xf32>
    %46 = vector.extract %45[0, 0, 0] : f32 from vector<1x1x1xf32>
    %c0_11 = arith.constant 0 : index
    %c0_12 = arith.constant 0 : index
    %c0_13 = arith.constant 0 : index
    %47 = vector.load %arg4[%c0_11, %c0_12, %c0_13] : memref<1x8x128xf32, #tpu.memory_space<vmem>>, vector<1x8x128xf32>
    %48 = vector.broadcast %46 : f32 to vector<1x8x128xf32>
    %49 = arith.addf %47, %48 : vector<1x8x128xf32>
    %c0_14 = arith.constant 0 : index
    %c0_15 = arith.constant 0 : index
    %c0_16 = arith.constant 0 : index
    %50 = vector.load %arg4[%c0_14, %c0_15, %c0_16] : memref<1x8x128xf32, #tpu.memory_space<vmem>>, vector<1x8x128xf32>
    tpu.vector_store %arg4[%c0_14, %c0_15, %c0_16], %49 {strides = array<i32>} : memref<1x8x128xf32, #tpu.memory_space<vmem>>, vector<1x8x128xf32>,
    return
  }
  func.func @transform_0(%arg0: i32, %arg1: i32) -> (i32, i32) {
    %c1_i32 = arith.constant 1 : i32
    %0 = arith.muli %arg0, %c1_i32 : i32
    %1 = arith.addi %0, %arg1 : i32
    %c0_i32 = arith.constant 0 : i32
    %c0_i32_0 = arith.constant 0 : i32
    return %1, %c0_i32 : i32, i32
  }
  func.func @transform_1(%arg0: i32, %arg1: i32) -> (i32, i32) {
    %c1_i32 = arith.constant 1 : i32
    %0 = arith.muli %arg0, %c1_i32 : i32
    %1 = arith.addi %0, %arg1 : i32
    %c0_i32 = arith.constant 0 : i32
    %c0_i32_0 = arith.constant 0 : i32
    return %1, %c0_i32 : i32, i32
  }
  func.func @transform_2(%arg0: i32, %arg1: i32) -> (i32, i32, i32) {
    %c0_i32 = arith.constant 0 : i32
    %c0_i32_0 = arith.constant 0 : i32
    %c0_i32_1 = arith.constant 0 : i32
    return %arg0, %c0_i32, %c0_i32_0 : i32, i32, i32
  }
}

</mosaic_0001>

<llo_original>
// kernel: tpu_custom_call.1
$region0: #{tpu_custom_call.1}
  #allocation0 [shape = 'u32[]', space=smem, size = 0x4, offset = 0x4, fixed_abs, tag = 'smem constant byte address 0x4 - core index']
  #allocation1 [shape = 'u32[144,128]{1,0:T(1,128)}', space=vmem, size = 0x12000, scoped, tag = 'internal scratch']
  %s0 = inlined_call_operand.vmem [shape: bf16[8,128], index: 0, kind: input, shape index: {}]
  %s1 = inlined_call_operand.vmem [shape: s32[8,1], index: 1, kind: input, shape index: {}]
  %s2 = inlined_call_operand.hbm [shape: f32[1,8,128], index: 2, kind: output, shape index: {}]
  %s3 = sld [smem:[#allocation0]]
  $region22: #{tpu_custom_call.1} parent=0
    _
  %s5 = ssub.s32 1, %s3
  %s6 = scalar_select 0, %s5, %s3
  $region1: #{tpu_custom_call.1} parent=0
    #allocation2 [shape = 'u8[4096]{0}', space=vmem, size = 0x1000, scoped, tag = 'output window, operand 0, single buffered']
    #allocation3 [shape = 's32[1]{0}', space=sflag, size = 0x4, scoped, tag = 'scoped memory for tpu_custom_call.1']
    %7 = vsyncpa [#allocation3], 0
    // Predicated region
    $region2: #{tpu_custom_call.1} parent=1 // pred_check
      _
    $region3: #{tpu_custom_call.1} parent=1 // pred_check_branch
      %9 = sbr.rel (0) target = $region5
    $region4: #{tpu_custom_call.1} parent=1 // pred_region
      %s10 = sadd.s32 0, 0
      %p11 = scmp.lt.s32.totalorder %s10, 0
      %s12 = scalar_select %p11, %s10, 0
      %s13 = smul.addr %s12, 4
      %s14 = scalar_lea.vmem %s0, %s13
      %s15 = sadd.s32 0, 0
    $region5: #{tpu_custom_call.1} parent=1 // pred_fallthru
      _
    // Predicated region
    $region6: #{tpu_custom_call.1} parent=1 // pred_check
      _
    $region7: #{tpu_custom_call.1} parent=1 // pred_check_branch
      %17 = sbr.rel (0) target = $region9
    $region8: #{tpu_custom_call.1} parent=1 // pred_region
      %s18 = sadd.s32 0, 0
      %p19 = scmp.lt.s32.totalorder %s18, 0
      %s20 = scalar_select %p19, %s18, 0
      %s21 = smul.addr %s20, 8
      %s22 = scalar_lea.vmem %s1, %s21
      %s23 = sadd.s32 0, 0
    $region9: #{tpu_custom_call.1} parent=1 // pred_fallthru
      _
    %s24 = sadd.s32 0, 0
    %p25 = scmp.lt.s32.totalorder %s24, 0
    %s26 = scalar_select %p25, %s24, 0
    %s27 = smul.addr %s26, 4
    %s28 = scalar_lea.vmem %s0, %s27
    %s29 = sadd.s32 0, 0
    %p30 = scmp.lt.s32.totalorder %s29, 0
    %s31 = scalar_select %p30, %s29, 0
    %s32 = smul.addr %s31, 8
    %s33 = scalar_lea.vmem %s1, %s32
    %s34 = sadd.s32 0, 0
    %p35 = scmp.lt.s32.totalorder %s34, 0
    %s36 = scalar_select %p35, %s34, 0
    %s37 = smul.addr %s36, 4
    %s38 = scalar_lea.vmem %s0, %s37
    %s39 = sadd.s32 0, 0
    %s40 = sadd.s32 0, 0
    %p41 = scmp.lt.s32.totalorder %s40, 0
    %s42 = scalar_select %p41, %s40, 0
    %s43 = smul.addr %s42, 8
    %s44 = scalar_lea.vmem %s1, %s43
    %s45 = sadd.s32 0, 0
    %p46 = scmp.eq.s32.totalorder 0, 0
    // Predicated region
    $region10: #{tpu_custom_call.1} parent=1 // pred_check
      %p47 = pneg %p46
    $region11: #{tpu_custom_call.1} parent=1 // pred_check_branch
      %49 = sbr.rel (%p47) target = $region13
    $region12: #{tpu_custom_call.1} parent=1 // pred_region
      %50 = vst [vmem:[#allocation2] sm:$0xff] 0.0
    $region13: #{tpu_custom_call.1} parent=1 // pred_fallthru
      _
    %v51 = vld [vmem:[%s38] sm:$0xf]
    %v52 = vunpack.c.l.bf16 %v51
    %53 = vmax.xlane.f32.xlu0 %v52
    %v54 = vpop.xlane.xlu0 %53
    %v55 = vsub.f32 %v52, %v54
    %v56 = vmul.f32 %v55, 1.442695
    %v57 = vpow.pop %v56
    %58 = vadd.xlane.f32.xlu0 %v57
    %v59 = vpop.xlane.xlu0 %58
    %v60 = vlaneseq
    %v61 = vand.u32 %v60, 127
    %v62 = vld [vmem:[%s44] sm:$0xff]
    %63 = vset.pattern.permute.xlu0 0
    %64 = vperm.xlu0 %63, %v62
    %v65 = vpop.permute.xlu0 %64
    %vm66 = vcmp.eq.s32.totalorder %v61, %v65
    %v67 = vsel %vm66, 1, 0
    %v68 = vcvt.s32.f32 %v67
    %v69 = vmul.f32 %v57, %v68
    %70 = vadd.xlane.f32.xlu0 %v69
    %v71 = vpop.xlane.xlu0 %70
    %v72 = vrcp.pop %v59
    %v73 = vsub.f32 %v57, %v71
    %v74 = vmul.f32 %v73, %v72
    %v75 = vadd.f32 %v74, 0.1
    %v76 = vmax.f32 %v75, 0.0
    %s77 = sadd.s32 0, 0
    %s78 = smul.u32 %s77, 8
    %v79 = vlaneseq
    %v80 = vshrl.u32 %v79, 7
    %v81 = vstv %s78
    %v82 = vadd.s32 %v81, %v80
    %vm83 = vcmp.lt.s32.totalorder %v82, 8
    %v84 = vsel %vm83, 1, 0
    %v85 = vcvt.s32.f32 %v84
    %86 = vadd.xlane.f32.xlu0 %v76
    %v87 = vpop.xlane.xlu0 %86
    %v88 = vmul.f32 %v87, %v85
    %vm89 = vcmask 7168
    %v90 = vsel %vm89, %v88, 0.0
    %91 = vadd.xlane.f32.xlu0 %v90
    %v92 = vpop.xlane.xlu0 %91
    %v93 = vrot.slane %v92, 4
    %v94 = vadd.f32 %v92, %v93
    %v95 = vrot.slane %v94, 2
    %v96 = vadd.f32 %v94, %v95
    %v97 = vrot.slane %v96, 1
    %v98 = vadd.f32 %v96, %v97
    %s99 = vtos %v98
    %v100 = vld [vmem:[#allocation2] sm:$0xff]
    %v101 = vstv %s99
    %v102 = vadd.f32 %v100, %v101
    %103 = vst [vmem:[#allocation2] sm:$0xff] %v102
    // Predicated region
    $region14: #{tpu_custom_call.1} parent=1 // pred_check
      _
    $region15: #{tpu_custom_call.1} parent=1 // pred_check_branch
      %105 = sbr.rel (0) target = $region17
    $region16: #{tpu_custom_call.1} parent=1 // pred_region
      %s107 = ssub.s32 128, 128
      %108 = vsyncadd [#allocation3], %s107
      %s110 = sshll.u32 [#allocation2], 4
      %s111 = int_to_ptr.vmem [resolvable:$true] %s110
      %113 = dma.vmem_to_hbm [thread:$0]  %s111, 128, %s2, [#allocation3]
    $region17: #{tpu_custom_call.1} parent=1 // pred_fallthru
      _
    // Predicated region
    $region18: #{tpu_custom_call.1} parent=1 // pred_check
      _
    $region19: #{tpu_custom_call.1} parent=1 // pred_check_branch
      %115 = sbr.rel (0) target = $region21
    $region20: #{tpu_custom_call.1} parent=1 // pred_region
      %116 = dma.done [#allocation3], 128
    $region21: #{tpu_custom_call.1} parent=1 // pred_fallthru
      _
    %117 = vsyncpa [#allocation3], 1

</llo_original>
